<compile_context>
chip_gen: v7x
topology: tpu7x:2x2x1
jax: 0.10.0
libtpu: 0.0.40
codegen_flags: <defaults>
</compile_context>

<pallas_src>
from functools import partial

import jax
import jax.numpy as jnp
from jax.experimental import pallas as pl
from jax.experimental.pallas import tpu as pltpu

# Mirrors config.REWARD_SCORE_MIN / config.REWARD_SCORE_MAX
REWARD_SCORE_MIN = 1.0
REWARD_SCORE_MAX = 10.0
# Raw-score equivalent of the module's neutral normalized score (0.5) used
# when the judge output cannot be parsed (signalled upstream as NaN).
_NEUTRAL_RAW = 0.5 * (REWARD_SCORE_MIN + REWARD_SCORE_MAX)

_TILE_BYTE_BUDGET = 2 * 1024 * 1024   # per input block (double-buffered -> ~4 MiB)
_LANE_TILE_MAX = 64 * 1024            # hard cap on lanes per tile


def _cdiv(a: int, b: int) -> int:
    return -(-a // b)


def _round_up(x: int, m: int) -> int:
    return _cdiv(x, m) * m


def _reward_kernel(packed_ref, out_ref):
    # packed_ref: [D+1, TB] bf16 -- rows 0..D-1 raw judge scores, row D valid mask
    # out_ref:    [1, TB]   f32  -- aggregated reward per sample (lane-dense)
    d = packed_ref.shape[0] - 1
    x = packed_ref[...].astype(jnp.float32)          # cast right after load (v5e-safe)
    s = x[:d, :]                                     # [D, TB]
    valid = x[d:, :]                                 # [1, TB]
    # Parse-failure sentinel (NaN) -> neutral score (normalized 0.5), as in the module.
    s = jnp.where(jnp.isnan(s), _NEUTRAL_RAW, s)
    # clamp as in _get_score_from_judge: score = max(MIN, min(MAX, score))
    s = jnp.clip(s, REWARD_SCORE_MIN, REWARD_SCORE_MAX)
    # sublane reduce over dimensions (XLU), batch stays on lanes
    ssum = jnp.sum(s, axis=0, keepdims=True)         # [1, TB]
    # folded normalize + mean: ((s - MIN)/(MAX-MIN)) averaged over D dims, masked
    scale = 1.0 / (d * (REWARD_SCORE_MAX - REWARD_SCORE_MIN))
    out_ref[...] = (ssum - d * REWARD_SCORE_MIN) * scale * valid


@jax.jit
def explainable_reward_pallas(scores: jax.Array, valid: jax.Array) -> jax.Array:
    """scores: [B, D] raw judge scores; valid: [B] mask -> [B] float32 rewards."""
    B, D = scores.shape

    # ---- tile selection (all Python, shapes are static under jit) ----------
    b128 = _round_up(max(B, 1), 128)
    # lane cap from a per-step byte budget on the packed bf16 input block
    tb_cap = max(128, min(_LANE_TILE_MAX,
                          (_TILE_BYTE_BUDGET // ((D + 1) * 2)) // 128 * 128))
    if b128 <= 128:
        n_tiles = 1
    else:
        # even, >= 2 tiles so v7x's two TensorCores both get work
        n_tiles = max(2, 2 * _cdiv(_cdiv(b128, tb_cap), 2))
    tb = min(_round_up(_cdiv(b128, n_tiles), 128), tb_cap)
    n_tiles = _cdiv(b128, tb)
    b_pad = n_tiles * tb

    # ---- layout plumbing (fused by XLA under this jit) ---------------------
    scores_t = jnp.transpose(scores.astype(jnp.bfloat16), (1, 0))       # [D, B]
    valid_row = valid.astype(jnp.bfloat16).reshape(1, B)                # [1, B]
    packed = jnp.concatenate([scores_t, valid_row], axis=0)             # [D+1, B]
    packed = jnp.pad(packed, ((0, 0), (0, b_pad - B)))                  # pad: valid=0

    out = pl.pallas_call(
        _reward_kernel,
        out_shape=jax.ShapeDtypeStruct((1, b_pad), jnp.float32),
        grid=(n_tiles,),
        in_specs=[
            # first dim (D+1) == full array extent, last dim tb is a 128-multiple
            pl.BlockSpec((D + 1, tb), lambda i: (0, i)),
        ],
        out_specs=pl.BlockSpec((1, tb), lambda i: (0, i)),
        compiler_params=pltpu.CompilerParams(
            dimension_semantics=("parallel",),   # shards tiles across TCs on v7x
        ),
    )(packed)

    return out.reshape(b_pad)[:B]


def _reference(scores, valid):
    s = scores.astype(jnp.float32)
    s = jnp.where(jnp.isnan(s), _NEUTRAL_RAW, s)
    s = jnp.clip(s, REWARD_SCORE_MIN, REWARD_SCORE_MAX)
    norm = (s - REWARD_SCORE_MIN) / (REWARD_SCORE_MAX - REWARD_SCORE_MIN)
    return jnp.mean(norm, axis=-1) * valid.astype(jnp.float32)


if __name__ == "__main__":
    key = jax.random.PRNGKey(0)

    ok = True
    # (B, D): small case matching the module's typical batch, plus a case that
    # exercises tail padding and a multi-tile ("parallel") grid.
    for B, D in ((8, 4), (300, 4)):
        key, k_scores, k_valid = jax.random.split(key, 3)
        # Integer judge scores, sampled slightly out of range to exercise the
        # clamp (the real module clamps parsed ints the same way).
        raw_scores = jax.random.randint(k_scores, (B, D), 0, 12).astype(jnp.float32)
        # Inject one parse-failure sentinel (NaN) -> neutral normalized 0.5.
        raw_scores = raw_scores.at[0, 0].set(jnp.nan)
        # Validity mask: invalid prompt/response pairs receive reward 0.0.
        valid = (jax.random.uniform(k_valid, (B,)) > 0.2).astype(jnp.float32)

        rewards = explainable_reward_pallas(raw_scores, valid)
        jax.block_until_ready(rewards)

        ref = _reference(raw_scores, valid)
        ok &= rewards.shape == (B,) and rewards.dtype == jnp.float32
        ok &= bool(jnp.allclose(rewards, ref, atol=1e-6))

    assert ok
    print("KERNEL_OK")
</pallas_src>

<mosaic_0001>
module attributes {stable_mosaic.version = 11 : i64} {
  func.func @_reward_kernel(%arg0: i32, %arg1: memref<5x128xbf16, #tpu.memory_space<vmem>>, %arg2: memref<1x128xf32, #tpu.memory_space<vmem>>) attributes {dimension_semantics = [#tpu.dimension_semantics<parallel>], iteration_bounds = array<i64: 1>, scalar_prefetch = 0 : i64, scratch_operands = 0 : i64, tpu.core_type = #tpu.core_type<tc>, window_params = [{transform_indices = @transform_0, window_bounds = array<i64: 5, 128>}, {transform_indices = @transform_1, window_bounds = array<i64: 1, 128>}]} {
    %c0 = arith.constant 0 : index
    %c0_0 = arith.constant 0 : index
    %0 = vector.load %arg1[%c0, %c0_0] : memref<5x128xbf16, #tpu.memory_space<vmem>>, vector<5x128xbf16>
    %1 = arith.extf %0 : vector<5x128xbf16> to vector<5x128xf32>
    %2 = vector.extract_strided_slice %1 {offsets = [0, 0], sizes = [4, 128], strides = [1, 1]} : vector<5x128xf32> to vector<4x128xf32>
    %3 = vector.extract_strided_slice %1 {offsets = [4, 0], sizes = [1, 128], strides = [1, 1]} : vector<5x128xf32> to vector<1x128xf32>
    %4 = arith.cmpf one, %2, %2 : vector<4x128xf32>
    %cst = arith.constant 5.500000e+00 : f32
    %5 = vector.broadcast %cst : f32 to vector<4x128xf32>
    %6 = arith.select %4, %5, %2 : vector<4x128xi1>, vector<4x128xf32>
    %cst_1 = arith.constant 1.000000e+00 : f32
    %cst_2 = arith.constant 1.000000e+01 : f32
    %7 = vector.broadcast %cst_1 : f32 to vector<4x128xf32>
    %8 = arith.maximumf %7, %6 : vector<4x128xf32>
    %9 = vector.broadcast %cst_2 : f32 to vector<4x128xf32>
    %10 = arith.minimumf %9, %8 : vector<4x128xf32>
    %cst_3 = arith.constant dense<0.000000e+00> : vector<128xf32>
    %11 = vector.multi_reduction <add>, %10, %cst_3 [0] : vector<4x128xf32> to vector<128xf32>
    %12 = vector.shape_cast %11 : vector<128xf32> to vector<1x128xf32>
    %cst_4 = arith.constant 4.000000e+00 : f32
    %13 = vector.broadcast %cst_4 : f32 to vector<1x128xf32>
    %14 = arith.subf %12, %13 : vector<1x128xf32>
    %cst_5 = arith.constant 0.027777778 : f32
    %15 = vector.broadcast %cst_5 : f32 to vector<1x128xf32>
    %16 = arith.mulf %14, %15 : vector<1x128xf32>
    %17 = arith.mulf %16, %3 : vector<1x128xf32>
    %c0_6 = arith.constant 0 : index
    %c0_7 = arith.constant 0 : index
    %18 = vector.load %arg2[%c0_6, %c0_7] : memref<1x128xf32, #tpu.memory_space<vmem>>, vector<1x128xf32>
    tpu.vector_store %arg2[%c0_6, %c0_7], %17 {strides = array<i32>} : memref<1x128xf32, #tpu.memory_space<vmem>>, vector<1x128xf32>,
    return
  }
  func.func @transform_0(%arg0: i32) -> (i32, i32) {
    %c0_i32 = arith.constant 0 : i32
    %c0_i32_0 = arith.constant 0 : i32
    return %c0_i32, %arg0 : i32, i32
  }
  func.func @transform_1(%arg0: i32) -> (i32, i32) {
    %c0_i32 = arith.constant 0 : i32
    %c0_i32_0 = arith.constant 0 : i32
    return %c0_i32, %arg0 : i32, i32
  }
}

</mosaic_0001>

<llo_original>
// kernel: explainable_reward_pallas.1
$region0: #{explainable_reward_pallas.1}
  #allocation0 [shape = 'u32[]', space=smem, size = 0x4, offset = 0x4, fixed_abs, tag = 'smem constant byte address 0x4 - core index']
  #allocation1 [shape = 'u32[144,128]{1,0:T(1,128)}', space=vmem, size = 0x12000, scoped, tag = 'internal scratch']
  %s0 = inlined_call_operand.vmem [shape: bf16[5,128], index: 0, kind: input, shape index: {}]
  %s1 = inlined_call_operand.vmem [shape: f32[1,128], index: 1, kind: output, shape index: {}]
  %s2 = sld [smem:[#allocation0]]
  $region14: #{explainable_reward_pallas.1} parent=0
    _
  %s4 = ssub.s32 1, %s2
  %s5 = scalar_select 0, %s4, %s2
  // Predicated region
  $region2: #{explainable_reward_pallas.1} parent=0 // pred_check
    _
  $region3: #{explainable_reward_pallas.1} parent=0 // pred_check_branch
    %7 = sbr.rel (0) target = $region5
  $region4: #{explainable_reward_pallas.1} parent=0 // pred_region
    _
  $region5: #{explainable_reward_pallas.1} parent=0 // pred_fallthru
    _
  %v8 = vld [vmem:[%s0] sm:$0x7]
  %v9 = vunpack.c.l.bf16 %v8
  %vm10 = vcmp.ne.f32.partialorder %v9, %v9
  %v11 = vsel %vm10, 5.5, %v9
  %v12 = vmax.f32 %v11, 1.0
  %v13 = vmin.f32 %v12, 10.0
  %vm14 = vcmask 1043456
  %v15 = vsel %vm14, %v13, 0.0
  %v16 = vrot.slane %v15, 4
  %v17 = vadd.f32 %v15, %v16
  %v18 = vrot.slane %v17, 2
  %v19 = vadd.f32 %v17, %v18
  %v20 = vrot.slane %v19, 1
  %v21 = vadd.f32 %v19, %v20
  %v22 = vsub.f32 %v21, 4.0
  %v23 = vmul.f32 %v22, 0.027777778
  %v24 = vmul.f32 %v23, %v9
  %25 = vst [vmem:[%s1 - $0x4] sm:$0x10] %v24
  // Predicated region
  $region6: #{explainable_reward_pallas.1} parent=0 // pred_check
    _
  $region7: #{explainable_reward_pallas.1} parent=0 // pred_check_branch
    %27 = sbr.rel (0) target = $region9
  $region8: #{explainable_reward_pallas.1} parent=0 // pred_region
    _
  $region9: #{explainable_reward_pallas.1} parent=0 // pred_fallthru
    _
  // Predicated region
  $region10: #{explainable_reward_pallas.1} parent=0 // pred_check
    _
  $region11: #{explainable_reward_pallas.1} parent=0 // pred_check_branch
    %29 = sbr.rel (0) target = $region13
  $region12: #{explainable_reward_pallas.1} parent=0 // pred_region
    _
  $region13: #{explainable_reward_pallas.1} parent=0 // pred_fallthru
    _

</llo_original>
